<compile_context>
chip_gen: v6e
topology: v6e:2x2x1
jax: 0.10.0
libtpu: 0.0.40
codegen_flags: <defaults>
</compile_context>

<pallas_src>
import functools

import jax
import jax.numpy as jnp
from jax.experimental import pallas as pl
from jax.experimental.pallas import tpu as pltpu


# --------------------------------------------------------------------------
# Kernel body.
# --------------------------------------------------------------------------
def _attn_kernel(x_ref, g_ref, wx_ref, wg_ref, bxg_ref, wp_ref, bp_ref, o_ref,
                 *, low_precision_gate):
    # Channels on sublanes, pixels on lanes:
    #   x_ref / g_ref / o_ref : (C, TN)
    #   wx_ref / wg_ref / wp_ref : (C, C)   (PyTorch (out, in) order)
    #   bxg_ref / bp_ref : (C, 1) float32 (pre-cast in the wrapper)
    x = x_ref[...]
    g = g_ref[...]

    # Stage 1: h = relu(Wx @ x + Wg @ g + (bx + bg)); native-dtype MXU operands,
    # f32 accumulation.
    h = jnp.dot(wx_ref[...], x, preferred_element_type=jnp.float32)
    h = h + jnp.dot(wg_ref[...], g, preferred_element_type=jnp.float32)
    h = jnp.maximum(h + bxg_ref[...], 0.0)

    # Stage 2: sigmoid(psi(h)) gate. Keep the psi matmul on the native-dtype
    # MXU path (cast the activation down to the weight dtype, accumulate f32).
    wp = wp_ref[...]
    p = jnp.dot(wp, h.astype(wp.dtype), preferred_element_type=jnp.float32)
    s = jax.nn.sigmoid(p + bp_ref[...])

    # identity * (gate + 1).  Gate math stays f32; the final multiply runs in
    # the activation dtype on chips with packed low-precision VALUs.
    if low_precision_gate:
        o_ref[...] = (x * (s + 1.0).astype(x.dtype)).astype(o_ref.dtype)
    else:
        o_ref[...] = (x.astype(jnp.float32) * (s + 1.0)).astype(o_ref.dtype)


# --------------------------------------------------------------------------
# Hardware introspection & tile sizing.
# --------------------------------------------------------------------------
def _round_up(x, m):
    return ((x + m - 1) // m) * m


def _sublane_granule(itemsize):
    # 8 sublanes of 32-bit; sub-32-bit dtypes pack along sublanes.
    return max(8, 32 // max(int(itemsize), 1))


def _device_kind():
    devs = jax.devices()
    if not devs:
        return ""
    return (getattr(devs[0], "device_kind", "") or "").lower()


def _physical_vmem_bytes(kind):
    # Prefer the runtime query; fall back to the per-generation table.  The
    # fallback is a perf heuristic only (never affects correctness), so a broad
    # except is acceptable here.
    try:
        info = pltpu.get_tpu_info()
        vmem = getattr(info, "vmem_capacity_bytes", None)
        if vmem:
            return int(vmem)
    except Exception:
        pass
    if "v7" in kind:
        return 64 << 20            # per-TensorCore on v7x
    return 128 << 20               # v5e / v6e


def _cores_per_chip(kind):
    return 2 if "v7" in kind else 1


def _choose_pixel_tile(hw, ch, act_itemsize, w_itemsize, batch, *,
                       vmem_limit_bytes, max_tile, min_grid_steps):
    """Largest lane-dense pixel tile that fits the VMEM budget."""
    padded_c = _round_up(ch, _sublane_granule(act_itemsize))
    lane_c = _round_up(max(ch, 1), 128)
    w_padded_c = _round_up(ch, _sublane_granule(w_itemsize))
    # Padded weight/bias blocks; x2 in case they end up double-buffered.
    weight_bytes = 2 * (3 * w_padded_c * lane_c * w_itemsize
                        + 2 * _round_up(ch, 8) * 128 * 4)
    headroom = 6 << 20             # compiler internal scratch / slack
    act_budget = max(vmem_limit_bytes - weight_bytes - headroom, 1 << 20)
    # x / g / out tiles, each double-buffered: 6 live (padded_c, TN) tiles.
    tn = act_budget // (6 * padded_c * act_itemsize)
    tn = max(128, (tn // 128) * 128)
    tn = min(tn, max_tile)
    # Keep enough grid steps that every TensorCore gets work (v7x megacore).
    if batch * pl.cdiv(hw, tn) < min_grid_steps and hw > 128:
        per_step = _round_up(pl.cdiv(hw, min_grid_steps), 128)
        tn = min(tn, max(128, per_step))
    if hw <= tn:
        return hw                  # single full-row tile (full-dim block is legal)
    return tn                      # multiple of 128; ragged tail -> masked partial block


# --------------------------------------------------------------------------
# Wrapper.
# --------------------------------------------------------------------------
def attn_forward(x_nchw, g_nchw, params, *, max_tile=32768,
                 vmem_limit_bytes=None):
    """x_nchw, g_nchw: (B, C, H, W). params: dict of conv weights/biases."""
    B, C, H, W = x_nchw.shape
    HW = H * W

    kind = _device_kind()
    physical_vmem = _physical_vmem_bytes(kind)
    if vmem_limit_bytes is None:
        # ~96 MiB usable on v5e/v6e (128 MiB physical), ~56 MiB on v7x (64 MiB/TC).
        if physical_vmem >= (128 << 20):
            vmem_limit_bytes = physical_vmem - (32 << 20)
        else:
            vmem_limit_bytes = physical_vmem - (8 << 20)
    vmem_limit_bytes = int(vmem_limit_bytes)

    # NCHW -> (B, C, H*W): contiguous reshape, no transpose / extra HBM pass.
    x3 = x_nchw.reshape(B, C, HW)
    g3 = g_nchw.reshape(B, C, HW)

    # PyTorch conv weight (out, in, 1, 1) -> (out, in); conv1x1 == W @ x + b[:, None].
    wx = params["wx_w"].reshape(C, C)
    wg = params["wg_w"].reshape(C, C)
    wp = params["psi_w"].reshape(C, C)
    # Fused stage-1 bias + psi bias, pre-cast to f32 (no per-step converts).
    bxg = (params["wx_b"].astype(jnp.float32)
           + params["wg_b"].astype(jnp.float32)).reshape(C, 1)
    bp = params["psi_b"].astype(jnp.float32).reshape(C, 1)

    act_itemsize = jnp.dtype(x_nchw.dtype).itemsize
    w_itemsize = jnp.dtype(wx.dtype).itemsize

    tn = _choose_pixel_tile(
        HW, C, act_itemsize, w_itemsize, B,
        vmem_limit_bytes=vmem_limit_bytes,
        max_tile=max_tile,
        min_grid_steps=_cores_per_chip(kind))
    n_tiles = pl.cdiv(HW, tn)

    tile_spec = pl.BlockSpec((None, C, tn), lambda b, j: (b, 0, j))

    def _weight_spec(shape):
        index_map = lambda b, j: (0, 0)
        if hasattr(pl, "Buffered"):
            try:
                # Grid-invariant weights: single-buffered is enough.
                return pl.BlockSpec(shape, index_map,
                                    pipeline_mode=pl.Buffered(1))
            except TypeError:
                # Older BlockSpec without the pipeline_mode kwarg; construction-
                # time check only, so real lowering errors are never swallowed.
                pass
        return pl.BlockSpec(shape, index_map)

    # bf16 gating multiply on chips with packed bf16 VALUs (v6e/v7x); f32 on v5e.
    low_precision_gate = (x_nchw.dtype == jnp.bfloat16) and ("v5" not in kind)
    kernel = functools.partial(_attn_kernel,
                               low_precision_gate=low_precision_gate)

    elems = B * C * HW
    cost = pl.CostEstimate(
        flops=6 * C * C * B * HW + 5 * elems,
        transcendentals=elems,                       # sigmoid exp per element
        bytes_accessed=3 * elems * act_itemsize
        + 3 * C * C * w_itemsize + 2 * C * 4,
    )

    out3 = pl.pallas_call(
        kernel,
        out_shape=jax.ShapeDtypeStruct((B, C, HW), x_nchw.dtype),
        grid_spec=pltpu.PrefetchScalarGridSpec(
            num_scalar_prefetch=0,
            grid=(B, n_tiles),
            in_specs=[tile_spec, tile_spec,
                      _weight_spec((C, C)), _weight_spec((C, C)),
                      _weight_spec((C, 1)),
                      _weight_spec((C, C)), _weight_spec((C, 1))],
            out_specs=tile_spec,
        ),
        compiler_params=pltpu.CompilerParams(
            dimension_semantics=("parallel", "parallel"),
            vmem_limit_bytes=vmem_limit_bytes),
        cost_estimate=cost,
    )(x3, g3, wx, wg, bxg, wp, bp)

    return out3.reshape(B, C, H, W)


# --------------------------------------------------------------------------
# Pure-JAX reference mirroring the PyTorch module (NCHW).
# --------------------------------------------------------------------------
def _reference(x, g, params):
    B, C, H, W = x.shape

    def conv1x1(t, w, b):
        return jnp.einsum("bchw,oc->bohw", t, w.reshape(C, C)) + b[None, :, None, None]

    hx = conv1x1(x, params["wx_w"], params["wx_b"])
    hg = conv1x1(g, params["wg_w"], params["wg_b"])
    h = jnp.maximum(hx + hg, 0.0)
    p = conv1x1(h, params["psi_w"], params["psi_b"])
    s = jax.nn.sigmoid(p)
    return x * (s + 1.0)


if __name__ == "__main__":
    B, C, H, W = 2, 4, 16, 16
    key = jax.random.PRNGKey(0)
    kx, kg, k1, k2, k3, k4, k5, k6 = jax.random.split(key, 8)

    x = jax.random.normal(kx, (B, C, H, W), dtype=jnp.float32)
    g = jax.random.normal(kg, (B, C, H, W), dtype=jnp.float32)

    # Deterministic parameter init (shapes from nn.Conv2d(ch, ch, 1)).
    scale = 1.0 / (C ** 0.5)
    params = {
        "wx_w": jax.random.uniform(k1, (C, C, 1, 1), minval=-scale, maxval=scale),
        "wx_b": jax.random.uniform(k2, (C,), minval=-scale, maxval=scale),
        "wg_w": jax.random.uniform(k3, (C, C, 1, 1), minval=-scale, maxval=scale),
        "wg_b": jax.random.uniform(k4, (C,), minval=-scale, maxval=scale),
        "psi_w": jax.random.uniform(k5, (C, C, 1, 1), minval=-scale, maxval=scale),
        "psi_b": jax.random.uniform(k6, (C,), minval=-scale, maxval=scale),
    }

    out = attn_forward(x, g, params)
    out = jax.block_until_ready(out)

    ref = _reference(x, g, params)
    assert out.shape == (B, C, H, W)
    assert jnp.allclose(out, ref, atol=1e-5, rtol=1e-5), "mismatch vs reference"

    print("KERNEL_OK")
</pallas_src>

<mosaic_0001>
module attributes {stable_mosaic.version = 11 : i64} {
  func.func @_attn_kernel(%arg0: i32, %arg1: i32, %arg2: memref<1x4x256xf32, #tpu.memory_space<vmem>>, %arg3: memref<1x4x256xf32, #tpu.memory_space<vmem>>, %arg4: memref<4x4xf32, #tpu.memory_space<vmem>>, %arg5: memref<4x4xf32, #tpu.memory_space<vmem>>, %arg6: memref<4x1xf32, #tpu.memory_space<vmem>>, %arg7: memref<4x4xf32, #tpu.memory_space<vmem>>, %arg8: memref<4x1xf32, #tpu.memory_space<vmem>>, %arg9: memref<1x4x256xf32, #tpu.memory_space<vmem>>) attributes {dimension_semantics = [#tpu.dimension_semantics<parallel>, #tpu.dimension_semantics<parallel>], iteration_bounds = array<i64: 2, 1>, scalar_prefetch = 0 : i64, scratch_operands = 0 : i64, tpu.core_type = #tpu.core_type<tc>, window_params = [{transform_indices = @transform_0, window_bounds = array<i64: 1, 4, 256>}, {transform_indices = @transform_1, window_bounds = array<i64: 1, 4, 256>}, {pipeline_mode = #tpu.pipeline_mode<synchronous>, transform_indices = @transform_2, window_bounds = array<i64: 4, 4>}, {pipeline_mode = #tpu.pipeline_mode<synchronous>, transform_indices = @transform_3, window_bounds = array<i64: 4, 4>}, {pipeline_mode = #tpu.pipeline_mode<synchronous>, transform_indices = @transform_4, window_bounds = array<i64: 4, 1>}, {pipeline_mode = #tpu.pipeline_mode<synchronous>, transform_indices = @transform_5, window_bounds = array<i64: 4, 4>}, {pipeline_mode = #tpu.pipeline_mode<synchronous>, transform_indices = @transform_6, window_bounds = array<i64: 4, 1>}, {transform_indices = @transform_7, window_bounds = array<i64: 1, 4, 256>}]} {
    %c0 = arith.constant 0 : index
    %c0_0 = arith.constant 0 : index
    %c0_1 = arith.constant 0 : index
    %0 = vector.load %arg2[%c0, %c0_0, %c0_1] : memref<1x4x256xf32, #tpu.memory_space<vmem>>, vector<1x4x256xf32>
    %1 = vector.shape_cast %0 : vector<1x4x256xf32> to vector<4x256xf32>
    %c0_2 = arith.constant 0 : index
    %c0_3 = arith.constant 0 : index
    %c0_4 = arith.constant 0 : index
    %2 = vector.load %arg3[%c0_2, %c0_3, %c0_4] : memref<1x4x256xf32, #tpu.memory_space<vmem>>, vector<1x4x256xf32>
    %3 = vector.shape_cast %2 : vector<1x4x256xf32> to vector<4x256xf32>
    %c0_5 = arith.constant 0 : index
    %c0_6 = arith.constant 0 : index
    %4 = vector.load %arg4[%c0_5, %c0_6] : memref<4x4xf32, #tpu.memory_space<vmem>>, vector<4x4xf32>
    %cst = arith.constant dense<0.000000e+00> : vector<4x256xf32>
    %5 = tpu.matmul %4, %1, %cst {dimension_numbers = #tpu.dot_dimension_numbers<[1], [0], [0], [1], [0, 0, 1, 1], [], []>} : vector<4x4xf32>, vector<4x256xf32>, vector<4x256xf32> -> vector<4x256xf32>
    %c0_7 = arith.constant 0 : index
    %c0_8 = arith.constant 0 : index
    %6 = vector.load %arg5[%c0_7, %c0_8] : memref<4x4xf32, #tpu.memory_space<vmem>>, vector<4x4xf32>
    %cst_9 = arith.constant dense<0.000000e+00> : vector<4x256xf32>
    %7 = tpu.matmul %6, %3, %cst_9 {dimension_numbers = #tpu.dot_dimension_numbers<[1], [0], [0], [1], [0, 0, 1, 1], [], []>} : vector<4x4xf32>, vector<4x256xf32>, vector<4x256xf32> -> vector<4x256xf32>
    %8 = arith.addf %5, %7 : vector<4x256xf32>
    %c0_10 = arith.constant 0 : index
    %c0_11 = arith.constant 0 : index
    %9 = vector.load %arg6[%c0_10, %c0_11] : memref<4x1xf32, #tpu.memory_space<vmem>>, vector<4x1xf32>
    %10 = vector.broadcast %9 : vector<4x1xf32> to vector<4x256xf32>
    %11 = arith.addf %8, %10 : vector<4x256xf32>
    %cst_12 = arith.constant 0.000000e+00 : f32
    %12 = vector.broadcast %cst_12 : f32 to vector<4x256xf32>
    %13 = arith.maximumf %11, %12 : vector<4x256xf32>
    %c0_13 = arith.constant 0 : index
    %c0_14 = arith.constant 0 : index
    %14 = vector.load %arg7[%c0_13, %c0_14] : memref<4x4xf32, #tpu.memory_space<vmem>>, vector<4x4xf32>
    %cst_15 = arith.constant dense<0.000000e+00> : vector<4x256xf32>
    %15 = tpu.matmul %14, %13, %cst_15 {dimension_numbers = #tpu.dot_dimension_numbers<[1], [0], [0], [1], [0, 0, 1, 1], [], []>} : vector<4x4xf32>, vector<4x256xf32>, vector<4x256xf32> -> vector<4x256xf32>
    %c0_16 = arith.constant 0 : index
    %c0_17 = arith.constant 0 : index
    %16 = vector.load %arg8[%c0_16, %c0_17] : memref<4x1xf32, #tpu.memory_space<vmem>>, vector<4x1xf32>
    %17 = vector.broadcast %16 : vector<4x1xf32> to vector<4x256xf32>
    %18 = arith.addf %15, %17 : vector<4x256xf32>
    %19 = arith.negf %18 : vector<4x256xf32>
    %20 = math.exp %19 : vector<4x256xf32>
    %cst_18 = arith.constant 1.000000e+00 : f32
    %21 = vector.broadcast %cst_18 : f32 to vector<4x256xf32>
    %22 = arith.addf %21, %20 : vector<4x256xf32>
    %23 = arith.divf %21, %22 : vector<4x256xf32>
    %cst_19 = arith.constant 1.000000e+00 : f32
    %24 = vector.broadcast %cst_19 : f32 to vector<4x256xf32>
    %25 = arith.addf %23, %24 : vector<4x256xf32>
    %26 = arith.mulf %1, %25 : vector<4x256xf32>
    %c0_20 = arith.constant 0 : index
    %c0_21 = arith.constant 0 : index
    %c0_22 = arith.constant 0 : index
    %27 = vector.load %arg9[%c0_20, %c0_21, %c0_22] : memref<1x4x256xf32, #tpu.memory_space<vmem>>, vector<1x4x256xf32>
    %28 = vector.shape_cast %27 : vector<1x4x256xf32> to vector<4x256xf32>
    %29 = vector.shape_cast %26 : vector<4x256xf32> to vector<1x4x256xf32>
    tpu.vector_store %arg9[%c0_20, %c0_21, %c0_22], %29 {strides = array<i32>} : memref<1x4x256xf32, #tpu.memory_space<vmem>>, vector<1x4x256xf32>,
    return
  }
  func.func @transform_0(%arg0: i32, %arg1: i32) -> (i32, i32, i32) {
    %c0_i32 = arith.constant 0 : i32
    %c0_i32_0 = arith.constant 0 : i32
    return %arg0, %c0_i32, %arg1 : i32, i32, i32
  }
  func.func @transform_1(%arg0: i32, %arg1: i32) -> (i32, i32, i32) {
    %c0_i32 = arith.constant 0 : i32
    %c0_i32_0 = arith.constant 0 : i32
    return %arg0, %c0_i32, %arg1 : i32, i32, i32
  }
  func.func @transform_2(%arg0: i32, %arg1: i32) -> (i32, i32) {
    %c0_i32 = arith.constant 0 : i32
    %c0_i32_0 = arith.constant 0 : i32
    %c0_i32_1 = arith.constant 0 : i32
    return %c0_i32, %c0_i32_0 : i32, i32
  }
  func.func @transform_3(%arg0: i32, %arg1: i32) -> (i32, i32) {
    %c0_i32 = arith.constant 0 : i32
    %c0_i32_0 = arith.constant 0 : i32
    %c0_i32_1 = arith.constant 0 : i32
    return %c0_i32, %c0_i32_0 : i32, i32
  }
  func.func @transform_4(%arg0: i32, %arg1: i32) -> (i32, i32) {
    %c0_i32 = arith.constant 0 : i32
    %c0_i32_0 = arith.constant 0 : i32
    %c0_i32_1 = arith.constant 0 : i32
    return %c0_i32, %c0_i32_0 : i32, i32
  }
  func.func @transform_5(%arg0: i32, %arg1: i32) -> (i32, i32) {
    %c0_i32 = arith.constant 0 : i32
    %c0_i32_0 = arith.constant 0 : i32
    %c0_i32_1 = arith.constant 0 : i32
    return %c0_i32, %c0_i32_0 : i32, i32
  }
  func.func @transform_6(%arg0: i32, %arg1: i32) -> (i32, i32) {
    %c0_i32 = arith.constant 0 : i32
    %c0_i32_0 = arith.constant 0 : i32
    %c0_i32_1 = arith.constant 0 : i32
    return %c0_i32, %c0_i32_0 : i32, i32
  }
  func.func @transform_7(%arg0: i32, %arg1: i32) -> (i32, i32, i32) {
    %c0_i32 = arith.constant 0 : i32
    %c0_i32_0 = arith.constant 0 : i32
    return %arg0, %c0_i32, %arg1 : i32, i32, i32
  }
}

</mosaic_0001>

<llo_original>
// kernel: tpu_custom_call.1
$region0: #{tpu_custom_call.1}
  #allocation0 [shape = 'u32[]', space=smem, size = 0x4, offset = 0x4, fixed_abs, tag = 'smem constant byte address 0x4 - core index']
  #allocation1 [shape = 'u32[144,128]{1,0:T(1,128)}', space=vmem, size = 0x12000, scoped, tag = 'internal scratch']
  %s0 = inlined_call_operand.hbm [shape: f32[2,4,256], index: 0, kind: input, shape index: {}]
  %s1 = inlined_call_operand.hbm [shape: f32[2,4,256], index: 1, kind: input, shape index: {}]
  %s2 = inlined_call_operand.vmem [shape: f32[4,4], index: 2, kind: input, shape index: {}]
  %s3 = inlined_call_operand.vmem [shape: f32[4,4], index: 3, kind: input, shape index: {}]
  %s4 = inlined_call_operand.vmem [shape: f32[4,1], index: 4, kind: input, shape index: {}]
  %s5 = inlined_call_operand.vmem [shape: f32[4,4], index: 5, kind: input, shape index: {}]
  %s6 = inlined_call_operand.vmem [shape: f32[4,1], index: 6, kind: input, shape index: {}]
  %s7 = inlined_call_operand.hbm [shape: f32[2,4,256], index: 7, kind: output, shape index: {}]
  %s8 = sld [smem:[#allocation0]]
  $region69: #{tpu_custom_call.1} parent=0
    _
  %s10 = ssub.s32 1, %s8
  %s11 = scalar_select 0, %s10, %s8
  $region1: #{tpu_custom_call.1} parent=0
    #allocation2 [shape = 'u8[8192]{0}', space=vmem, size = 0x2000, scoped, tag = 'input window, operand 0']
    #allocation3 [shape = 's32[2]{0}', space=sflag, size = 0x8, scoped, tag = 'scoped memory for tpu_custom_call.1']
    #allocation4 [shape = 's32[2]{0}', space=sflag, size = 0x8, scoped, tag = 'scoped memory for tpu_custom_call.1']
    #allocation5 [shape = 'u8[8192]{0}', space=vmem, size = 0x2000, scoped, tag = 'input window, operand 1']
    #allocation6 [shape = 's32[2]{0}', space=sflag, size = 0x8, scoped, tag = 'scoped memory for tpu_custom_call.1']
    #allocation7 [shape = 'u8[8192]{0}', space=vmem, size = 0x2000, scoped, tag = 'output window, operand 0']
    %12 = vsyncpa [#allocation3], 0
    %s13 = scalar_lea.sflag [#allocation3], 1
    %14 = vsyncpa %s13, 0
    %15 = vsyncpa [#allocation6], 0
    %s16 = scalar_lea.sflag [#allocation6], 1
    %17 = vsyncpa %s16, 0
    %18 = vsyncpa [#allocation4], 0
    %s19 = scalar_lea.sflag [#allocation4], 1
    %20 = vsyncpa %s19, 0
    loop: start=0, step=1, limit=4
    $region2: #{tpu_custom_call.1} parent=1 // loop_pre_header
      _
    $region3: #{tpu_custom_call.1} parent=1 // loop_header
      %s22 = sphi 0, %s26
      %p23 = scmp.ge.s32.totalorder %s22, 4
      %s29 = sphi 0, %s41
      %s30 = sphi 0, %s37
      %s31 = sphi 0, %s29
      %s32 = sphi 0, %s30
      %s33 = sphi 0, %s31
      %s34 = sphi 0, %s32
      %s46 = sphi 0, %s48
      %s49 = sphi 0, %s46
      %s50 = sphi 0, %s49
      %s66 = sphi 0, %s50
      %s74 = sphi 0, %s76
      %s77 = sphi 0, %s74
      %s78 = sphi 0, %s77
      %s94 = sphi 0, %s78
      %s98 = sphi 0, %s98
      %s100 = sphi 0, %s98
      %s101 = sphi 0, %s100
      %s115 = sphi 0, %s101
      %s119 = sphi 0, %s119
      %s121 = sphi 0, %s119
      %s122 = sphi 0, %s121
      %s136 = sphi 0, %s122
      %s140 = sphi 0, %s140
      %s142 = sphi 0, %s140
      %s143 = sphi 0, %s142
      %s157 = sphi 0, %s143
      %s161 = sphi 0, %s161
      %s163 = sphi 0, %s161
      %s164 = sphi 0, %s163
      %s178 = sphi 0, %s164
      %s182 = sphi 0, %s182
      %s184 = sphi 0, %s182
      %s185 = sphi 0, %s184
      %s199 = sphi 0, %s185
      %s207 = sphi 0, %s209
      %s210 = sphi 0, %s207
      %s211 = sphi 0, %s210
      %s227 = sphi 0, %s211
    $region4: #{tpu_custom_call.1} parent=1 // loop_header_branch
      %25 = sbr.rel (%p23) target = $region8
    $region5: #{tpu_custom_call.1} parent=1 // loop_body
      %s27 = ssub.s32 %s22, 1
      %s28 = ssub.s32 %s22, 2
      %s35 = sadd.s32 1, %s30
      %p36 = scmp.ge.s32.totalorder %s35, 1
      %s37 = scalar_select %p36, 0, %s35
      %s38 = sadd.s32 1, %s29
      %s39 = scalar_select %p36, %s38, %s29
      %p40 = scmp.ge.s32.totalorder %s39, 2
      %s41 = scalar_select %p40, 0, %s39
      %s42 = ssub.s32 %s29, %s41
      %s43 = ssub.s32 %s30, %s37
      %s44 = sor.u32 %s42, %s43
      %p45 = scmp.eq.s32.totalorder %s44, 0
      %s47 = sadd.s32 %s46, 1
      %s48 = scalar_select %p45, %s46, %s47
      %p51 = pneg %p45
      %p52 = scmp.eq.s32.totalorder %s22, 1
      %p53 = por %p51, %p52
      %p54 = scmp.ne.s32.totalorder %s46, %s49
      %p55 = scmp.eq.s32.totalorder %s22, 0
      %p56 = por %p54, %p55
      %p57 = scmp.ne.s32.totalorder %s46, %s49
      %p58 = scmp.eq.s32.totalorder %s27, 1
      %p59 = por %p57, %p58
      %p60 = scmp.ne.s32.totalorder %s49, %s50
      %p61 = scmp.eq.s32.totalorder %s27, 0
      %p62 = por %p60, %p61
      %p63 = scmp.ne.s32.totalorder %s49, %s50
      %p64 = scmp.eq.s32.totalorder %s28, 1
      %p65 = por %p63, %p64
      %p67 = scmp.ne.s32.totalorder %s50, %s66
      %p68 = scmp.eq.s32.totalorder %s28, 0
      %p69 = por %p67, %p68
      %s70 = ssub.s32 %s29, %s41
      %s71 = ssub.s32 %s30, %s37
      %s72 = sor.u32 %s70, %s71
      %p73 = scmp.eq.s32.totalorder %s72, 0
      %s75 = sadd.s32 %s74, 1
      %s76 = scalar_select %p73, %s74, %s75
      %p79 = pneg %p73
      %p80 = scmp.eq.s32.totalorder %s22, 1
      %p81 = por %p79, %p80
      %p82 = scmp.ne.s32.totalorder %s74, %s77
      %p83 = scmp.eq.s32.totalorder %s22, 0
      %p84 = por %p82, %p83
      %p85 = scmp.ne.s32.totalorder %s74, %s77
      %p86 = scmp.eq.s32.totalorder %s27, 1
      %p87 = por %p85, %p86
      %p88 = scmp.ne.s32.totalorder %s77, %s78
      %p89 = scmp.eq.s32.totalorder %s27, 0
      %p90 = por %p88, %p89
      %p91 = scmp.ne.s32.totalorder %s77, %s78
      %p92 = scmp.eq.s32.totalorder %s28, 1
      %p93 = por %p91, %p92
      %p95 = scmp.ne.s32.totalorder %s78, %s94
      %p96 = scmp.eq.s32.totalorder %s28, 0
      %p97 = por %p95, %p96
      %s99 = sadd.s32 %s98, 1
      %p102 = scmp.eq.s32.totalorder %s22, 1
      %p103 = scmp.ne.s32.totalorder %s98, %s100
      %p104 = scmp.eq.s32.totalorder %s22, 0
      %p105 = por %p103, %p104
      %p106 = scmp.ne.s32.totalorder %s98, %s100
      %p107 = scmp.eq.s32.totalorder %s27, 1
      %p108 = por %p106, %p107
      %p109 = scmp.ne.s32.totalorder %s100, %s101
      %p110 = scmp.eq.s32.totalorder %s27, 0
      %p111 = por %p109, %p110
      %p112 = scmp.ne.s32.totalorder %s100, %s101
      %p113 = scmp.eq.s32.totalorder %s28, 1
      %p114 = por %p112, %p113
      %p116 = scmp.ne.s32.totalorder %s101, %s115
      %p117 = scmp.eq.s32.totalorder %s28, 0
      %p118 = por %p116, %p117
      %s120 = sadd.s32 %s119, 1
      %p123 = scmp.eq.s32.totalorder %s22, 1
      %p124 = scmp.ne.s32.totalorder %s119, %s121
      %p125 = scmp.eq.s32.totalorder %s22, 0
      %p126 = por %p124, %p125
      %p127 = scmp.ne.s32.totalorder %s119, %s121
      %p128 = scmp.eq.s32.totalorder %s27, 1
      %p129 = por %p127, %p128
      %p130 = scmp.ne.s32.totalorder %s121, %s122
      %p131 = scmp.eq.s32.totalorder %s27, 0
      %p132 = por %p130, %p131
      %p133 = scmp.ne.s32.totalorder %s121, %s122
      %p134 = scmp.eq.s32.totalorder %s28, 1
      %p135 = por %p133, %p134
      %p137 = scmp.ne.s32.totalorder %s122, %s136
      %p138 = scmp.eq.s32.totalorder %s28, 0
      %p139 = por %p137, %p138
      %s141 = sadd.s32 %s140, 1
      %p144 = scmp.eq.s32.totalorder %s22, 1
      %p145 = scmp.ne.s32.totalorder %s140, %s142
      %p146 = scmp.eq.s32.totalorder %s22, 0
      %p147 = por %p145, %p146
      %p148 = scmp.ne.s32.totalorder %s140, %s142
      %p149 = scmp.eq.s32.totalorder %s27, 1
      %p150 = por %p148, %p149
      %p151 = scmp.ne.s32.totalorder %s142, %s143
      %p152 = scmp.eq.s32.totalorder %s27, 0
      %p153 = por %p151, %p152
      %p154 = scmp.ne.s32.totalorder %s142, %s143
      %p155 = scmp.eq.s32.totalorder %s28, 1
      %p156 = por %p154, %p155
      %p158 = scmp.ne.s32.totalorder %s143, %s157
      %p159 = scmp.eq.s32.totalorder %s28, 0
      %p160 = por %p158, %p159
      %s162 = sadd.s32 %s161, 1
      %p165 = scmp.eq.s32.totalorder %s22, 1
      %p166 = scmp.ne.s32.totalorder %s161, %s163
      %p167 = scmp.eq.s32.totalorder %s22, 0
      %p168 = por %p166, %p167
      %p169 = scmp.ne.s32.totalorder %s161, %s163
      %p170 = scmp.eq.s32.totalorder %s27, 1
      %p171 = por %p169, %p170
      %p172 = scmp.ne.s32.totalorder %s163, %s164
      %p173 = scmp.eq.s32.totalorder %s27, 0
      %p174 = por %p172, %p173
      %p175 = scmp.ne.s32.totalorder %s163, %s164
      %p176 = scmp.eq.s32.totalorder %s28, 1
      %p177 = por %p175, %p176
      %p179 = scmp.ne.s32.totalorder %s164, %s178
      %p180 = scmp.eq.s32.totalorder %s28, 0
      %p181 = por %p179, %p180
      %s183 = sadd.s32 %s182, 1
      %p186 = scmp.eq.s32.totalorder %s22, 1
      %p187 = scmp.ne.s32.totalorder %s182, %s184
      %p188 = scmp.eq.s32.totalorder %s22, 0
      %p189 = por %p187, %p188
      %p190 = scmp.ne.s32.totalorder %s182, %s184
      %p191 = scmp.eq.s32.totalorder %s27, 1
      %p192 = por %p190, %p191
      %p193 = scmp.ne.s32.totalorder %s184, %s185
      %p194 = scmp.eq.s32.totalorder %s27, 0
      %p195 = por %p193, %p194
      %p196 = scmp.ne.s32.totalorder %s184, %s185
      %p197 = scmp.eq.s32.totalorder %s28, 1
      %p198 = por %p196, %p197
      %p200 = scmp.ne.s32.totalorder %s185, %s199
      %p201 = scmp.eq.s32.totalorder %s28, 0
      %p202 = por %p200, %p201
      %s203 = ssub.s32 %s29, %s41
      %s204 = ssub.s32 %s30, %s37
      %s205 = sor.u32 %s203, %s204
      %p206 = scmp.eq.s32.totalorder %s205, 0
      %s208 = sadd.s32 %s207, 1
      %s209 = scalar_select %p206, %s207, %s208
      %p212 = pneg %p206
      %p213 = scmp.eq.s32.totalorder %s22, 1
      %p214 = por %p212, %p213
      %p215 = scmp.ne.s32.totalorder %s207, %s210
      %p216 = scmp.eq.s32.totalorder %s22, 0
      %p217 = por %p215, %p216
      %p218 = scmp.ne.s32.totalorder %s207, %s210
      %p219 = scmp.eq.s32.totalorder %s27, 1
      %p220 = por %p218, %p219
      %p221 = scmp.ne.s32.totalorder %s210, %s211
      %p222 = scmp.eq.s32.totalorder %s27, 0
      %p223 = por %p221, %p222
      %p224 = scmp.ne.s32.totalorder %s210, %s211
      %p225 = scmp.eq.s32.totalorder %s28, 1
      %p226 = por %p224, %p225
      %p228 = scmp.ne.s32.totalorder %s211, %s227
      %p229 = scmp.eq.s32.totalorder %s28, 0
      %p230 = por %p228, %p229
      %p231 = scmp.le.s32.totalorder 1, %s22
      %p232 = scmp.lt.s32.totalorder %s22, 3
      %p233 = pnand %p231, %p232
      %p234 = pneg %p233
      // Predicated region
      $region9: #{tpu_custom_call.1} parent=5 // pred_check
        _
      $region10: #{tpu_custom_call.1} parent=5 // pred_check_branch
        %236 = sbr.rel (%p233) target = $region12
      $region11: #{tpu_custom_call.1} parent=5 // pred_region
        %s237 = ssub.s32 %s22, 1
        // Predicated region
        $region13: #{tpu_custom_call.1} parent=11 // pred_check
          %p238 = pneg %p111
        $region14: #{tpu_custom_call.1} parent=11 // pred_check_branch
          %240 = sbr.rel (%p238) target = $region16
        $region15: #{tpu_custom_call.1} parent=11 // pred_region
          _
        $region16: #{tpu_custom_call.1} parent=11 // pred_fallthru
          _
        // Predicated region
        $region17: #{tpu_custom_call.1} parent=11 // pred_check
          %p241 = pneg %p132
        $region18: #{tpu_custom_call.1} parent=11 // pred_check_branch
          %243 = sbr.rel (%p241) target = $region20
        $region19: #{tpu_custom_call.1} parent=11 // pred_region
          _
        $region20: #{tpu_custom_call.1} parent=11 // pred_fallthru
          _
        // Predicated region
        $region21: #{tpu_custom_call.1} parent=11 // pred_check
          %p244 = pneg %p153
        $region22: #{tpu_custom_call.1} parent=11 // pred_check_branch
          %246 = sbr.rel (%p244) target = $region24
        $region23: #{tpu_custom_call.1} parent=11 // pred_region
          _
        $region24: #{tpu_custom_call.1} parent=11 // pred_fallthru
          _
        // Predicated region
        $region25: #{tpu_custom_call.1} parent=11 // pred_check
          %p247 = pneg %p174
        $region26: #{tpu_custom_call.1} parent=11 // pred_check_branch
          %249 = sbr.rel (%p247) target = $region28
        $region27: #{tpu_custom_call.1} parent=11 // pred_region
          _
        $region28: #{tpu_custom_call.1} parent=11 // pred_fallthru
          _
        // Predicated region
        $region29: #{tpu_custom_call.1} parent=11 // pred_check
          %p250 = pneg %p195
        $region30: #{tpu_custom_call.1} parent=11 // pred_check_branch
          %252 = sbr.rel (%p250) target = $region32
        $region31: #{tpu_custom_call.1} parent=11 // pred_region
          _
        $region32: #{tpu_custom_call.1} parent=11 // pred_fallthru
          _
      $region12: #{tpu_custom_call.1} parent=5 // pred_fallthru
        _
      %p253 = scmp.lt.s32.totalorder %s22, 2
      // Predicated region
      $region33: #{tpu_custom_call.1} parent=5 // pred_check
        %p254 = pneg %p253
      $region34: #{tpu_custom_call.1} parent=5 // pred_check_branch
        %256 = sbr.rel (%p254) target = $region36
      $region35: #{tpu_custom_call.1} parent=5 // pred_region
        // Predicated region
        $region37: #{tpu_custom_call.1} parent=35 // pred_check
          %p257 = pneg %p56
        $region38: #{tpu_custom_call.1} parent=35 // pred_check_branch
          %259 = sbr.rel (%p257) target = $region40
        $region39: #{tpu_custom_call.1} parent=35 // pred_region
          %s260 = sand.u32 %s46, 1
          %s261 = scalar_lea.sflag [#allocation3], %s260
          %s262 = sand.u32 %s46, 1
          %s263 = smul.addr %s262, 8
          %s264 = scalar_lea.vmem [#allocation2], %s263
          %s265 = smul.u32 2, %s30
          %s267 = ssub.s32 128, 128
          %268 = vsyncadd %s261, %s267
          %s269 = smul.addr %s29, 2
          %s270 = sadd.s32 %s265, %s269
          %s271 = smul.addr %s270, 64
          %s272 = scalar_lea.hbm %s0, %s271
          %s274 = sshll.u32 %s264, 4
          %s275 = int_to_ptr.vmem [resolvable:$true] %s274
          %277 = dma.hbm_to_vmem [thread:$0]  %s272, 128, %s275, %s261
        $region40: #{tpu_custom_call.1} parent=35 // pred_fallthru
          _
        // Predicated region
        $region41: #{tpu_custom_call.1} parent=35 // pred_check
          %p278 = pneg %p84
        $region42: #{tpu_custom_call.1} parent=35 // pred_check_branch
          %280 = sbr.rel (%p278) target = $region44
        $region43: #{tpu_custom_call.1} parent=35 // pred_region
          %s281 = sand.u32 %s74, 1
          %s282 = scalar_lea.sflag [#allocation6], %s281
          %s283 = sand.u32 %s74, 1
          %s284 = smul.addr %s283, 8
          %s285 = scalar_lea.vmem [#allocation5], %s284
          %s286 = smul.u32 2, %s30
          %s288 = ssub.s32 128, 128
          %289 = vsyncadd %s282, %s288
          %s290 = smul.addr %s29, 2
          %s291 = sadd.s32 %s286, %s290
          %s292 = smul.addr %s291, 64
          %s293 = scalar_lea.hbm %s1, %s292
          %s295 = sshll.u32 %s285, 4
          %s296 = int_to_ptr.vmem [resolvable:$true] %s295
          %298 = dma.hbm_to_vmem [thread:$0]  %s293, 128, %s296, %s282
        $region44: #{tpu_custom_call.1} parent=35 // pred_fallthru
          _
      $region36: #{tpu_custom_call.1} parent=5 // pred_fallthru
        _
      %p299 = scmp.le.s32.totalorder 1, %s22
      %p300 = scmp.lt.s32.totalorder %s22, 3
      %p301 = pnand %p299, %p300
      %p302 = pneg %p301
      // Predicated region
      $region45: #{tpu_custom_call.1} parent=5 // pred_check
        _
      $region46: #{tpu_custom_call.1} parent=5 // pred_check_branch
        %304 = sbr.rel (%p301) target = $region48
      $region47: #{tpu_custom_call.1} parent=5 // pred_region
        %s305 = ssub.s32 %s22, 1
        %s306 = sand.u32 %s49, 1
        %s307 = scalar_lea.sflag [#allocation3], %s306
        %s308 = sand.u32 %s49, 1
        %s309 = smul.addr %s308, 8
        %s310 = scalar_lea.vmem [#allocation2], %s309
        // Predicated region
        $region49: #{tpu_custom_call.1} parent=47 // pred_check
          %p311 = pneg %p62
        $region50: #{tpu_custom_call.1} parent=47 // pred_check_branch
          %313 = sbr.rel (%p311) target = $region52
        $region51: #{tpu_custom_call.1} parent=47 // pred_region
          %314 = dma.done %s307, 128
        $region52: #{tpu_custom_call.1} parent=47 // pred_fallthru
          _
        %s315 = sand.u32 %s77, 1
        %s316 = scalar_lea.sflag [#allocation6], %s315
        %s317 = sand.u32 %s77, 1
        %s318 = smul.addr %s317, 8
        %s319 = scalar_lea.vmem [#allocation5], %s318
        // Predicated region
        $region53: #{tpu_custom_call.1} parent=47 // pred_check
          %p320 = pneg %p90
        $region54: #{tpu_custom_call.1} parent=47 // pred_check_branch
          %322 = sbr.rel (%p320) target = $region56
        $region55: #{tpu_custom_call.1} parent=47 // pred_region
          %323 = dma.done %s316, 128
        $region56: #{tpu_custom_call.1} parent=47 // pred_fallthru
          _
        %s324 = sand.u32 %s49, 1
        %s325 = scalar_lea.sflag [#allocation3], %s324
        %s326 = sand.u32 %s49, 1
        %s327 = smul.addr %s326, 8
        %s328 = scalar_lea.vmem [#allocation2], %s327
        %p329 = pneg %p62
        %p330 = pneg %p59
        %s331 = sand.u32 %s77, 1
        %s332 = scalar_lea.sflag [#allocation6], %s331
        %s333 = sand.u32 %s77, 1
        %s334 = smul.addr %s333, 8
        %s335 = scalar_lea.vmem [#allocation5], %s334
        %p336 = pneg %p90
        %p337 = pneg %p87
        %p338 = pneg %p111
        %p339 = pneg %p108
        %p340 = pneg %p132
        %p341 = pneg %p129
        %p342 = pneg %p153
        %p343 = pneg %p150
        %p344 = pneg %p174
        %p345 = pneg %p171
        %p346 = pneg %p195
        %p347 = pneg %p192
        %p348 = pneg %p223
        %p349 = pneg %p220
        %s350 = sand.u32 %s210, 1
        %s351 = scalar_lea.sflag [#allocation4], %s350
        %s352 = sand.u32 %s210, 1
        %s353 = smul.addr %s352, 8
        %s354 = scalar_lea.vmem [#allocation7], %s353
        %s355 = smul.u32 2, %s32
        %s356 = smul.u32 2, %s32
        %s357 = smul.u32 2, %s32
        %v358 = vld [vmem:[%s310] sm:$0xff]
        %v359 = vld [vmem:[%s319] sm:$0xff]
        %v360 = vld [vmem:[%s2] sm:$0xf]
        %v361 = vld [vmem:[%s3] sm:$0xf]
        %v363 = vcombine.high %v359, %v359
        %vm364 = vcmask 31744
        %v366 = vsel %vm364, %v361, 0
        %vm368 = vcmask 1043456
        %v369 = vsel %vm368, %v359, 0
        %v371 = vsel %vm368, %v363, 0
        %373 = vmatprep.subr.mxu0 0.0
        %374 = vmatpush1.msra.mxu0 0.0
        %375 = vmatprep.subr.mxu0 0.0
        %376 = vmatpush1.msra.mxu0 0.0
        %377 = vmatprep.subr.mxu0 0.0
        %378 = vmatpush1.msra.mxu0 0.0
        %379 = vmatprep.subr.mxu0 0.0
        %380 = vmatpush1.msra.mxu0 0.0
        %381 = vmatprep.subr.mxu0 0.0
        %382 = vmatpush1.msra.mxu0 0.0
        %383 = vmatprep.subr.mxu0 0.0
        %384 = vmatpush1.msra.mxu0 0.0
        %385 = vmatprep.subr.mxu0 0.0
        %386 = vmatpush1.msra.mxu0 0.0
        %387 = vmatprep.subr.mxu0 0.0
        %388 = vmatpush1.msra.mxu0 0.0
        %389 = vmatprep.subr.mxu0 0.0
        %390 = vmatpush1.msra.mxu0 0.0
        %391 = vmatprep.subr.mxu0 0.0
        %392 = vmatpush1.msra.mxu0 0.0
        %393 = vmatprep.subr.mxu0 0.0
        %394 = vmatpush1.msra.mxu0 0.0
        %395 = vmatprep.subr.mxu0 0.0
        %396 = vmatpush1.msra.mxu0 0.0
        %397 = vmatprep.subr.mxu0 0.0
        %398 = vmatpush1.msra.mxu0 0.0
        %399 = vmatprep.subr.mxu0 0.0
        %400 = vmatpush1.msra.mxu0 0.0
        %401 = vmatprep.subr.mxu0 0.0
        %402 = vmatpush1.msra.mxu0 0.0
        %403 = vmatprep.subr.mxu0 %v371
        %404 = vmatpush1.msra.mxu0 %v369
        %405 = vmatprep.subr.mxu0 0.0
        %406 = vmatpush2.msra.mxu0 0.0
        %407 = vmatprep.subr.mxu0 0.0
        %408 = vmatpush2.msra.mxu0 0.0
        %409 = vmatprep.subr.mxu0 0.0
        %410 = vmatpush2.msra.mxu0 0.0
        %411 = vmatprep.subr.mxu0 0.0
        %412 = vmatpush2.msra.mxu0 0.0
        %413 = vmatprep.subr.mxu0 0.0
        %414 = vmatpush2.msra.mxu0 0.0
        %415 = vmatprep.subr.mxu0 0.0
        %416 = vmatpush2.msra.mxu0 0.0
        %417 = vmatprep.subr.mxu0 0.0
        %418 = vmatpush2.msra.mxu0 0.0
        %419 = vmatprep.subr.mxu0 0.0
        %420 = vmatpush2.msra.mxu0 0.0
        %421 = vmatprep.subr.mxu0 0.0
        %422 = vmatpush2.msra.mxu0 0.0
        %423 = vmatprep.subr.mxu0 0.0
        %424 = vmatpush2.msra.mxu0 0.0
        %425 = vmatprep.subr.mxu0 0.0
        %426 = vmatpush2.msra.mxu0 0.0
        %427 = vmatprep.subr.mxu0 0.0
        %428 = vmatpush2.msra.mxu0 0.0
        %429 = vmatprep.subr.mxu0 0.0
        %430 = vmatpush2.msra.mxu0 0.0
        %431 = vmatprep.subr.mxu0 0.0
        %432 = vmatpush2.msra.mxu0 0.0
        %433 = vmatprep.subr.mxu0 0.0
        %434 = vmatpush2.msra.mxu0 0.0
        %435 = vmatprep.subr.mxu0 0.0
        %436 = vmatpush2.msra.mxu0 0.0
        %437 = vmatprep.mubr.f32.mxu0 0.0
        %438 = vmatmul.mubr.f32.gmra.mxu0 %v366
        %v439 = vpop.f32.mrf.mxu0
        %v440 = vadd.f32 0.0, %v439
        %v441 = vpop.f32.mrf.mxu0
        %v442 = vadd.f32 0.0, %v441
        %443 = vdwg.mxu0
        %v445 = vcombine.high %v358, %v358
        %v447 = vsel %vm364, %v360, 0
        %v449 = vsel %vm368, %v358, 0
        %v451 = vsel %vm368, %v445, 0
        %453 = vmatprep.subr.mxu0 0.0
        %454 = vmatpush1.msra.mxu0 0.0
        %455 = vmatprep.subr.mxu0 0.0
        %456 = vmatpush1.msra.mxu0 0.0
        %457 = vmatprep.subr.mxu0 0.0
        %458 = vmatpush1.msra.mxu0 0.0
        %459 = vmatprep.subr.mxu0 0.0
        %460 = vmatpush1.msra.mxu0 0.0
        %461 = vmatprep.subr.mxu0 0.0
        %462 = vmatpush1.msra.mxu0 0.0
        %463 = vmatprep.subr.mxu0 0.0
        %464 = vmatpush1.msra.mxu0 0.0
        %465 = vmatprep.subr.mxu0 0.0
        %466 = vmatpush1.msra.mxu0 0.0
        %467 = vmatprep.subr.mxu0 0.0
        %468 = vmatpush1.msra.mxu0 0.0
        %469 = vmatprep.subr.mxu0 0.0
        %470 = vmatpush1.msra.mxu0 0.0
        %471 = vmatprep.subr.mxu0 0.0
        %472 = vmatpush1.msra.mxu0 0.0
        %473 = vmatprep.subr.mxu0 0.0
        %474 = vmatpush1.msra.mxu0 0.0
        %475 = vmatprep.subr.mxu0 0.0
        %476 = vmatpush1.msra.mxu0 0.0
        %477 = vmatprep.subr.mxu0 0.0
        %478 = vmatpush1.msra.mxu0 0.0
        %479 = vmatprep.subr.mxu0 0.0
        %480 = vmatpush1.msra.mxu0 0.0
        %481 = vmatprep.subr.mxu0 0.0
        %482 = vmatpush1.msra.mxu0 0.0
        %483 = vmatprep.subr.mxu0 %v451
        %484 = vmatpush1.msra.mxu0 %v449
        %485 = vmatprep.subr.mxu0 0.0
        %486 = vmatpush2.msra.mxu0 0.0
        %487 = vmatprep.subr.mxu0 0.0
        %488 = vmatpush2.msra.mxu0 0.0
        %489 = vmatprep.subr.mxu0 0.0
        %490 = vmatpush2.msra.mxu0 0.0
        %491 = vmatprep.subr.mxu0 0.0
        %492 = vmatpush2.msra.mxu0 0.0
        %493 = vmatprep.subr.mxu0 0.0
        %494 = vmatpush2.msra.mxu0 0.0
        %495 = vmatprep.subr.mxu0 0.0
        %496 = vmatpush2.msra.mxu0 0.0
        %497 = vmatprep.subr.mxu0 0.0
        %498 = vmatpush2.msra.mxu0 0.0
        %499 = vmatprep.subr.mxu0 0.0
        %500 = vmatpush2.msra.mxu0 0.0
        %501 = vmatprep.subr.mxu0 0.0
        %502 = vmatpush2.msra.mxu0 0.0
        %503 = vmatprep.subr.mxu0 0.0
        %504 = vmatpush2.msra.mxu0 0.0
        %505 = vmatprep.subr.mxu0 0.0
        %506 = vmatpush2.msra.mxu0 0.0
        %507 = vmatprep.subr.mxu0 0.0
        %508 = vmatpush2.msra.mxu0 0.0
        %509 = vmatprep.subr.mxu0 0.0
        %510 = vmatpush2.msra.mxu0 0.0
        %511 = vmatprep.subr.mxu0 0.0
        %512 = vmatpush2.msra.mxu0 0.0
        %513 = vmatprep.subr.mxu0 0.0
        %514 = vmatpush2.msra.mxu0 0.0
        %515 = vmatprep.subr.mxu0 0.0
        %516 = vmatpush2.msra.mxu0 0.0
        %517 = vmatprep.mubr.f32.mxu0 0.0
        %518 = vmatmul.mubr.f32.gmra.mxu0 %v447
        %v519 = vpop.f32.mrf.mxu0
        %v520 = vadd.f32 %v440, %v519
        %v521 = vpop.f32.mrf.mxu0
        %v522 = vadd.f32 %v442, %v521
        %523 = vdwg.mxu0
        %v524 = vld [vmem:[%s4] sm:$0xf]
        %526 = vset.pattern.permute.xlu0 0
        %527 = vperm.xlu0 %526, %v524
        %v528 = vpop.permute.xlu0 %527
        %v530 = vadd.f32 %v520, %v528
        %v531 = vadd.f32 %v522, %v528
        %v532 = vmax.f32 %v530, 0.0
        %v533 = vmax.f32 %v531, 0.0
        %v534 = vld [vmem:[%s5] sm:$0xf]
        %v535 = vld [vmem:[%s6] sm:$0xf]
        %537 = vset.pattern.permute.xlu0 0
        %538 = vperm.xlu0 %537, %v535
        %v539 = vpop.permute.xlu0 %538
        %v542 = vsel %vm364, %v534, 0
        %v545 = vsel %vm368, %v532, 0
        %v548 = vsel %vm368, %v533, 0
        %550 = vmatprep.subr.mxu0 0.0
        %551 = vmatpush1.msra.mxu0 0.0
        %552 = vmatprep.subr.mxu0 0.0
        %553 = vmatpush1.msra.mxu0 0.0
        %554 = vmatprep.subr.mxu0 0.0
        %555 = vmatpush1.msra.mxu0 0.0
        %556 = vmatprep.subr.mxu0 0.0
        %557 = vmatpush1.msra.mxu0 0.0
        %558 = vmatprep.subr.mxu0 0.0
        %559 = vmatpush1.msra.mxu0 0.0
        %560 = vmatprep.subr.mxu0 0.0
        %561 = vmatpush1.msra.mxu0 0.0
        %562 = vmatprep.subr.mxu0 0.0
        %563 = vmatpush1.msra.mxu0 0.0
        %564 = vmatprep.subr.mxu0 0.0
        %565 = vmatpush1.msra.mxu0 0.0
        %566 = vmatprep.subr.mxu0 0.0
        %567 = vmatpush1.msra.mxu0 0.0
        %568 = vmatprep.subr.mxu0 0.0
        %569 = vmatpush1.msra.mxu0 0.0
        %570 = vmatprep.subr.mxu0 0.0
        %571 = vmatpush1.msra.mxu0 0.0
        %572 = vmatprep.subr.mxu0 0.0
        %573 = vmatpush1.msra.mxu0 0.0
        %574 = vmatprep.subr.mxu0 0.0
        %575 = vmatpush1.msra.mxu0 0.0
        %576 = vmatprep.subr.mxu0 0.0
        %577 = vmatpush1.msra.mxu0 0.0
        %578 = vmatprep.subr.mxu0 0.0
        %579 = vmatpush1.msra.mxu0 0.0
        %580 = vmatprep.subr.mxu0 %v548
        %581 = vmatpush1.msra.mxu0 %v545
        %582 = vmatprep.subr.mxu0 0.0
        %583 = vmatpush2.msra.mxu0 0.0
        %584 = vmatprep.subr.mxu0 0.0
        %585 = vmatpush2.msra.mxu0 0.0
        %586 = vmatprep.subr.mxu0 0.0
        %587 = vmatpush2.msra.mxu0 0.0
        %588 = vmatprep.subr.mxu0 0.0
        %589 = vmatpush2.msra.mxu0 0.0
        %590 = vmatprep.subr.mxu0 0.0
        %591 = vmatpush2.msra.mxu0 0.0
        %592 = vmatprep.subr.mxu0 0.0
        %593 = vmatpush2.msra.mxu0 0.0
        %594 = vmatprep.subr.mxu0 0.0
        %595 = vmatpush2.msra.mxu0 0.0
        %596 = vmatprep.subr.mxu0 0.0
        %597 = vmatpush2.msra.mxu0 0.0
        %598 = vmatprep.subr.mxu0 0.0
        %599 = vmatpush2.msra.mxu0 0.0
        %600 = vmatprep.subr.mxu0 0.0
        %601 = vmatpush2.msra.mxu0 0.0
        %602 = vmatprep.subr.mxu0 0.0
        %603 = vmatpush2.msra.mxu0 0.0
        %604 = vmatprep.subr.mxu0 0.0
        %605 = vmatpush2.msra.mxu0 0.0
        %606 = vmatprep.subr.mxu0 0.0
        %607 = vmatpush2.msra.mxu0 0.0
        %608 = vmatprep.subr.mxu0 0.0
        %609 = vmatpush2.msra.mxu0 0.0
        %610 = vmatprep.subr.mxu0 0.0
        %611 = vmatpush2.msra.mxu0 0.0
        %612 = vmatprep.subr.mxu0 0.0
        %613 = vmatpush2.msra.mxu0 0.0
        %614 = vmatprep.mubr.f32.mxu0 0.0
        %615 = vmatmul.mubr.f32.gmra.mxu0 %v542
        %v616 = vpop.f32.mrf.mxu0
        %v617 = vadd.f32 %v539, %v616
        %v618 = vpop.f32.mrf.mxu0
        %v619 = vadd.f32 %v539, %v618
        %620 = vdwg.mxu0
        %v621 = vxor.u32 %v617, 2147483648
        %v622 = vxor.u32 %v619, 2147483648
        %v623 = vmul.f32 %v621, 1.442695
        %v624 = vpow.pop %v623
        %v625 = vmul.f32 %v622, 1.442695
        %v626 = vpow.pop %v625
        %v627 = vadd.f32 %v624, 1.0
        %v628 = vadd.f32 %v626, 1.0
        %v629 = vrcp.pop %v627
        %v630 = vmul.f32 1.0, %v629
        %v631 = vrcp.pop %v628
        %v632 = vmul.f32 1.0, %v631
        %v633 = vadd.f32 %v630, 1.0
        %v634 = vadd.f32 %v632, 1.0
        %v637 = vcombine.low %v633, %v634
        %v639 = vmul.f32 %v358, %v637
        %640 = vst [vmem:[%s354] sm:$0xff] %v639
        %s641 = sand.u32 %s210, 1
        %s642 = scalar_lea.sflag [#allocation4], %s641
        %s643 = sand.u32 %s210, 1
        %s644 = smul.addr %s643, 8
        %s645 = scalar_lea.vmem [#allocation7], %s644
        // Predicated region
        $region57: #{tpu_custom_call.1} parent=47 // pred_check
          %p646 = pneg %p220
        $region58: #{tpu_custom_call.1} parent=47 // pred_check_branch
          %648 = sbr.rel (%p646) target = $region60
        $region59: #{tpu_custom_call.1} parent=47 // pred_region
          %s649 = smul.u32 2, %s32
          %s651 = ssub.s32 128, 128
          %652 = vsyncadd %s642, %s651
          %s653 = smul.addr %s31, 2
          %s654 = sadd.s32 %s649, %s653
          %s655 = smul.addr %s654, 64
          %s656 = scalar_lea.hbm %s7, %s655
          %s658 = sshll.u32 %s645, 4
          %s659 = int_to_ptr.vmem [resolvable:$true] %s658
          %661 = dma.vmem_to_hbm [thread:$0]  %s659, 128, %s656, %s642
        $region60: #{tpu_custom_call.1} parent=47 // pred_fallthru
          _
      $region48: #{tpu_custom_call.1} parent=5 // pred_fallthru
        _
      %p662 = scmp.le.s32.totalorder 2, %s22
      // Predicated region
      $region61: #{tpu_custom_call.1} parent=5 // pred_check
        %p663 = pneg %p662
      $region62: #{tpu_custom_call.1} parent=5 // pred_check_branch
        %665 = sbr.rel (%p663) target = $region64
      $region63: #{tpu_custom_call.1} parent=5 // pred_region
        %s666 = ssub.s32 %s22, 2
        // Predicated region
        $region65: #{tpu_custom_call.1} parent=63 // pred_check
          %p667 = pneg %p226
        $region66: #{tpu_custom_call.1} parent=63 // pred_check_branch
          %669 = sbr.rel (%p667) target = $region68
        $region67: #{tpu_custom_call.1} parent=63 // pred_region
          %s670 = sand.u32 %s211, 1
          %s671 = scalar_lea.sflag [#allocation4], %s670
          %s672 = sand.u32 %s211, 1
          %s673 = smul.addr %s672, 8
          %s674 = scalar_lea.vmem [#allocation7], %s673
          %675 = dma.done %s671, 128
        $region68: #{tpu_custom_call.1} parent=63 // pred_fallthru
          _
      $region64: #{tpu_custom_call.1} parent=5 // pred_fallthru
        _
    $region6: #{tpu_custom_call.1} parent=1 // loop_footer
      %s26 = sadd.s32 1, %s22
    $region7: #{tpu_custom_call.1} parent=1 // loop_footer_branch
      %21 = sbr.rel target = $region3
    $region8: #{tpu_custom_call.1} parent=1 // loop_exit
      _
    %676 = vsyncpa [#allocation3], 1
    %s677 = scalar_lea.sflag [#allocation3], 1
    %678 = vsyncpa %s677, 1
    %679 = vsyncpa [#allocation6], 1
    %s680 = scalar_lea.sflag [#allocation6], 1
    %681 = vsyncpa %s680, 1
    %682 = vsyncpa [#allocation4], 1
    %s683 = scalar_lea.sflag [#allocation4], 1
    %684 = vsyncpa %s683, 1

</llo_original>
